<compile_context>
chip_gen: v7x
topology: tpu7x:2x2x1
jax: 0.10.0
libtpu: 0.0.40
codegen_flags: <defaults>
</compile_context>

<pallas_src>
import numpy as np
import jax
import jax.numpy as jnp
from jax.experimental import pallas as pl
from jax.experimental.pallas import tpu as pltpu

LANE = 128      # TPU lane width — hidden dims padded to this
SUBLANE = 8     # sublane width — batch rounded to this if needed


# ----------------------------------------------------------------------------
# Mock theta function (pure Python, used only for deterministic weight init)
# ----------------------------------------------------------------------------
def mock_theta_f(q: complex, max_n: int = 50) -> complex:
    """Ramanujan's third-order mock theta function f(q)."""
    result = complex(1.0)
    for n in range(1, max_n + 1):
        numerator = q ** (n ** 2)
        denominator = np.prod([(1 + q ** k) ** 2 for k in range(1, n + 1)])
        result += numerator / denominator
    return result


def nn_theta_f(q: complex, max_n: int, hidden_size: int) -> complex:
    """NeuralNetwork.f(): parent f(q) times (1 + hidden_size/1000)."""
    return mock_theta_f(q, max_n) * (1.0 + hidden_size / 1000.0)


def _round_up(x: int, m: int) -> int:
    return ((x + m - 1) // m) * m


# ----------------------------------------------------------------------------
# Deterministic parameter init (mirrors _initialize_weights_with_theta),
# stored transposed (in, out), hidden dims zero-padded to 128, bf16 weights.
# ----------------------------------------------------------------------------
def xavier_uniform(key, fan_in, fan_out, gain):
    # torch.nn.init.xavier_uniform_: U(-a, a), a = gain * sqrt(6 / (fan_in + fan_out))
    a = gain * np.sqrt(6.0 / (fan_in + fan_out))
    return jax.random.uniform(key, (fan_in, fan_out), jnp.float32, -a, a)


def init_params(key, q, max_n, input_size, hidden_size, output_size):
    theta = nn_theta_f(q, max_n, hidden_size)
    scale = abs(theta.real) if theta.real != 0 else 0.1
    bias_val = float(theta.real * 0.01)

    hid_p = _round_up(hidden_size, LANE)

    k1, k2, k3 = jax.random.split(key, 3)
    w1 = xavier_uniform(k1, input_size, hidden_size, scale)
    w2 = xavier_uniform(k2, hidden_size, hidden_size, scale)
    w3 = xavier_uniform(k3, hidden_size, output_size, scale)

    # Zero-padding of the hidden dims keeps the forward pass numerically
    # identical: padded hidden units are relu(0 + 0) = 0 and feed zero weight
    # rows downstream.
    w1_p = jnp.zeros((input_size, hid_p), jnp.bfloat16).at[:, :hidden_size].set(
        w1.astype(jnp.bfloat16))
    w2_p = jnp.zeros((hid_p, hid_p), jnp.bfloat16).at[:hidden_size, :hidden_size].set(
        w2.astype(jnp.bfloat16))
    w3_p = jnp.zeros((hid_p, output_size), jnp.bfloat16).at[:hidden_size, :].set(
        w3.astype(jnp.bfloat16))
    b1_p = jnp.zeros((1, hid_p), jnp.float32).at[:, :hidden_size].set(bias_val)
    b2_p = jnp.zeros((1, hid_p), jnp.float32).at[:, :hidden_size].set(bias_val)
    b3_s = jnp.full((1, 1), bias_val, jnp.float32)   # scalar -> SMEM
    return (w1_p, b1_p, w2_p, b2_p, w3_p, b3_s)


# ----------------------------------------------------------------------------
# Pallas kernel: fused 3-layer MLP (bf16 matmuls on MXU, f32 accumulate,
# bias + relu on VPU, output written directly at (tile_b, output_size))
# ----------------------------------------------------------------------------
def mlp_kernel(x_ref, w1_ref, b1_ref, w2_ref, b2_ref, w3_ref, b3_ref, o_ref):
    # fc1 + relu (dropout in eval mode == identity); x cast f32->bf16 in-kernel
    # so the wrapper never materializes a padded/cast copy in HBM.
    x = x_ref[...].astype(jnp.bfloat16)
    h1 = jnp.dot(x, w1_ref[...], preferred_element_type=jnp.float32)
    h1 = jnp.maximum(h1 + b1_ref[...], 0.0)
    # fc2 + relu
    h2 = jnp.dot(h1.astype(jnp.bfloat16), w2_ref[...],
                 preferred_element_type=jnp.float32)
    h2 = jnp.maximum(h2 + b2_ref[...], 0.0)
    # fc3: scalar bias read from SMEM
    y = jnp.dot(h2.astype(jnp.bfloat16), w3_ref[...],
                preferred_element_type=jnp.float32)
    o_ref[...] = y + b3_ref[0, 0]


def mlp_forward(x, params):
    w1, b1, w2, b2, w3, b3 = params
    batch, input_size = x.shape
    in_dim, hid_p = w1.shape
    out_dim = w3.shape[1]
    assert in_dim == input_size

    # Round batch up to the sublane width if needed (no-op for batch=256).
    b_pad = _round_up(batch, SUBLANE)
    if b_pad != batch:
        x = jnp.pad(x, ((0, b_pad - batch), (0, 0)))

    # One tile covering the whole batch -> grid=(1,).  Only for very large
    # batches do we split into 512-row "parallel" tiles (v7x megacore win).
    if b_pad <= 1024:
        tile_b = b_pad
    else:
        tile_b = 512
        if b_pad % tile_b:
            extra = _round_up(b_pad, tile_b) - b_pad
            x = jnp.pad(x, ((0, extra), (0, 0)))
            b_pad += extra
    n_tiles = b_pad // tile_b

    flops = 2 * b_pad * (input_size * hid_p + hid_p * hid_p + hid_p * out_dim)
    bytes_accessed = (x.size * 4 + w1.size * 2 + w2.size * 2 + w3.size * 2
                      + b1.size * 4 + b2.size * 4 + b3.size * 4
                      + b_pad * out_dim * 4)

    out = pl.pallas_call(
        mlp_kernel,
        out_shape=jax.ShapeDtypeStruct((b_pad, out_dim), jnp.float32),
        grid=(n_tiles,),
        in_specs=[
            pl.BlockSpec((tile_b, input_size), lambda i: (i, 0)),       # x tile (f32)
            pl.BlockSpec((input_size, hid_p), lambda i: (0, 0)),        # W1 (resident)
            pl.BlockSpec((1, hid_p), lambda i: (0, 0)),                 # b1
            pl.BlockSpec((hid_p, hid_p), lambda i: (0, 0)),             # W2 (resident)
            pl.BlockSpec((1, hid_p), lambda i: (0, 0)),                 # b2
            pl.BlockSpec((hid_p, out_dim), lambda i: (0, 0)),           # W3 (resident)
            pl.BlockSpec((1, 1), lambda i: (0, 0),
                         memory_space=pltpu.MemorySpace.SMEM),          # b3 scalar
        ],
        out_specs=pl.BlockSpec((tile_b, out_dim), lambda i: (i, 0)),
        compiler_params=pltpu.CompilerParams(
            dimension_semantics=("parallel",)),
        cost_estimate=pl.CostEstimate(flops=flops, transcendentals=0,
                                      bytes_accessed=bytes_accessed),
    )(x, w1, b1, w2, b2, w3, b3)

    return out[:batch] if b_pad != batch else out


if __name__ == "__main__":
    # Module defaults: input_size=10, hidden_size=64, output_size=1
    q = 0.5 + 0.1j
    max_n = 50
    input_size, hidden_size, output_size = 10, 64, 1
    batch = 256   # whole batch in one tile; grid=(1,)

    key = jax.random.PRNGKey(0)
    k_params, k_x = jax.random.split(key)
    params = init_params(k_params, q, max_n, input_size, hidden_size, output_size)
    x = jax.random.normal(k_x, (batch, input_size), jnp.float32)

    y = mlp_forward(x, params)
    y = jax.block_until_ready(y)
    assert y.shape == (batch, output_size)

    # --- correctness checks ---------------------------------------------
    w1, b1, w2, b2, w3, b3 = params
    w1u = w1[:, :hidden_size]
    w2u = w2[:hidden_size, :hidden_size]
    w3u = w3[:hidden_size, :]
    b1u = b1[:, :hidden_size]
    b2u = b2[:, :hidden_size]

    # (a) Reference mirroring the kernel's bf16/f32 mixed precision exactly.
    xb = x.astype(jnp.bfloat16)
    h1m = jnp.maximum(jnp.dot(xb, w1u, preferred_element_type=jnp.float32) + b1u, 0.0)
    h2m = jnp.maximum(jnp.dot(h1m.astype(jnp.bfloat16), w2u,
                              preferred_element_type=jnp.float32) + b2u, 0.0)
    y_matched = jnp.dot(h2m.astype(jnp.bfloat16), w3u,
                        preferred_element_type=jnp.float32) + b3[0, 0]
    assert bool(jnp.allclose(y, y_matched, atol=2e-3, rtol=2e-3)), (
        "Pallas kernel mismatch vs matched-precision reference: "
        f"max abs diff {float(jnp.max(jnp.abs(y - y_matched)))}")

    # (b) Loose semantic check against a full-f32 forward (bf16 quantization
    #     of weights/activations is the only difference).
    h1f = jnp.maximum(x @ w1u.astype(jnp.float32) + b1u, 0.0)
    h2f = jnp.maximum(h1f @ w2u.astype(jnp.float32) + b2u, 0.0)
    y_f32 = h2f @ w3u.astype(jnp.float32) + b3[0, 0]
    assert bool(jnp.allclose(y, y_f32, atol=1e-1, rtol=1e-1)), (
        "Pallas kernel mismatch vs f32 reference: "
        f"max abs diff {float(jnp.max(jnp.abs(y - y_f32)))}")

    print("KERNEL_OK")
</pallas_src>

<mosaic_0001>
module attributes {stable_mosaic.version = 11 : i64} {
  func.func @mlp_kernel(%arg0: i32, %arg1: memref<256x10xf32, #tpu.memory_space<vmem>>, %arg2: memref<10x128xbf16, #tpu.memory_space<vmem>>, %arg3: memref<1x128xf32, #tpu.memory_space<vmem>>, %arg4: memref<128x128xbf16, #tpu.memory_space<vmem>>, %arg5: memref<1x128xf32, #tpu.memory_space<vmem>>, %arg6: memref<128x1xbf16, #tpu.memory_space<vmem>>, %arg7: memref<1x1xf32, #tpu.memory_space<smem>>, %arg8: memref<256x1xf32, #tpu.memory_space<vmem>>) attributes {dimension_semantics = [#tpu.dimension_semantics<parallel>], iteration_bounds = array<i64: 1>, scalar_prefetch = 0 : i64, scratch_operands = 0 : i64, tpu.core_type = #tpu.core_type<tc>, window_params = [{transform_indices = @transform_0, window_bounds = array<i64: 256, 10>}, {pipeline_mode = #tpu.pipeline_mode<synchronous>, transform_indices = @transform_1, window_bounds = array<i64: 10, 128>}, {pipeline_mode = #tpu.pipeline_mode<synchronous>, transform_indices = @transform_2, window_bounds = array<i64: 1, 128>}, {pipeline_mode = #tpu.pipeline_mode<synchronous>, transform_indices = @transform_3, window_bounds = array<i64: 128, 128>}, {pipeline_mode = #tpu.pipeline_mode<synchronous>, transform_indices = @transform_4, window_bounds = array<i64: 1, 128>}, {pipeline_mode = #tpu.pipeline_mode<synchronous>, transform_indices = @transform_5, window_bounds = array<i64: 128, 1>}, {transform_indices = @transform_6, window_bounds = array<i64: 1, 1>}, {transform_indices = @transform_7, window_bounds = array<i64: 256, 1>}]} {
    %c0 = arith.constant 0 : index
    %c0_0 = arith.constant 0 : index
    %0 = vector.load %arg1[%c0, %c0_0] : memref<256x10xf32, #tpu.memory_space<vmem>>, vector<256x10xf32>
    %1 = arith.truncf %0 : vector<256x10xf32> to vector<256x10xbf16>
    %c0_1 = arith.constant 0 : index
    %c0_2 = arith.constant 0 : index
    %2 = vector.load %arg2[%c0_1, %c0_2] : memref<10x128xbf16, #tpu.memory_space<vmem>>, vector<10x128xbf16>
    %cst = arith.constant dense<0.000000e+00> : vector<256x128xf32>
    %3 = tpu.matmul %1, %2, %cst {dimension_numbers = #tpu.dot_dimension_numbers<[1], [0], [0], [1], [0, 0, 1, 1], [], []>} : vector<256x10xbf16>, vector<10x128xbf16>, vector<256x128xf32> -> vector<256x128xf32>
    %c0_3 = arith.constant 0 : index
    %c0_4 = arith.constant 0 : index
    %4 = vector.load %arg3[%c0_3, %c0_4] : memref<1x128xf32, #tpu.memory_space<vmem>>, vector<1x128xf32>
    %5 = vector.broadcast %4 : vector<1x128xf32> to vector<256x128xf32>
    %6 = arith.addf %3, %5 : vector<256x128xf32>
    %cst_5 = arith.constant 0.000000e+00 : f32
    %7 = vector.broadcast %cst_5 : f32 to vector<256x128xf32>
    %8 = arith.maximumf %6, %7 : vector<256x128xf32>
    %9 = arith.truncf %8 : vector<256x128xf32> to vector<256x128xbf16>
    %c0_6 = arith.constant 0 : index
    %c0_7 = arith.constant 0 : index
    %10 = vector.load %arg4[%c0_6, %c0_7] : memref<128x128xbf16, #tpu.memory_space<vmem>>, vector<128x128xbf16>
    %cst_8 = arith.constant dense<0.000000e+00> : vector<256x128xf32>
    %11 = tpu.matmul %9, %10, %cst_8 {dimension_numbers = #tpu.dot_dimension_numbers<[1], [0], [0], [1], [0, 0, 1, 1], [], []>} : vector<256x128xbf16>, vector<128x128xbf16>, vector<256x128xf32> -> vector<256x128xf32>
    %c0_9 = arith.constant 0 : index
    %c0_10 = arith.constant 0 : index
    %12 = vector.load %arg5[%c0_9, %c0_10] : memref<1x128xf32, #tpu.memory_space<vmem>>, vector<1x128xf32>
    %13 = vector.broadcast %12 : vector<1x128xf32> to vector<256x128xf32>
    %14 = arith.addf %11, %13 : vector<256x128xf32>
    %cst_11 = arith.constant 0.000000e+00 : f32
    %15 = vector.broadcast %cst_11 : f32 to vector<256x128xf32>
    %16 = arith.maximumf %14, %15 : vector<256x128xf32>
    %17 = arith.truncf %16 : vector<256x128xf32> to vector<256x128xbf16>
    %c0_12 = arith.constant 0 : index
    %c0_13 = arith.constant 0 : index
    %18 = vector.load %arg6[%c0_12, %c0_13] : memref<128x1xbf16, #tpu.memory_space<vmem>>, vector<128x1xbf16>
    %cst_14 = arith.constant dense<0.000000e+00> : vector<256x1xf32>
    %19 = tpu.matmul %17, %18, %cst_14 {dimension_numbers = #tpu.dot_dimension_numbers<[1], [0], [0], [1], [0, 0, 1, 1], [], []>} : vector<256x128xbf16>, vector<128x1xbf16>, vector<256x1xf32> -> vector<256x1xf32>
    %c0_15 = arith.constant 0 : index
    %c0_16 = arith.constant 0 : index
    %20 = memref.load %arg7[%c0_15, %c0_16] : memref<1x1xf32, #tpu.memory_space<smem>>
    %21 = vector.broadcast %20 : f32 to vector<256x1xf32>
    %22 = arith.addf %19, %21 : vector<256x1xf32>
    %c0_17 = arith.constant 0 : index
    %c0_18 = arith.constant 0 : index
    %23 = vector.load %arg8[%c0_17, %c0_18] : memref<256x1xf32, #tpu.memory_space<vmem>>, vector<256x1xf32>
    tpu.vector_store %arg8[%c0_17, %c0_18], %22 {strides = array<i32>} : memref<256x1xf32, #tpu.memory_space<vmem>>, vector<256x1xf32>,
    return
  }
  func.func @transform_0(%arg0: i32) -> (i32, i32) {
    %c0_i32 = arith.constant 0 : i32
    %c0_i32_0 = arith.constant 0 : i32
    return %arg0, %c0_i32 : i32, i32
  }
  func.func @transform_1(%arg0: i32) -> (i32, i32) {
    %c0_i32 = arith.constant 0 : i32
    %c0_i32_0 = arith.constant 0 : i32
    %c0_i32_1 = arith.constant 0 : i32
    return %c0_i32, %c0_i32_0 : i32, i32
  }
  func.func @transform_2(%arg0: i32) -> (i32, i32) {
    %c0_i32 = arith.constant 0 : i32
    %c0_i32_0 = arith.constant 0 : i32
    %c0_i32_1 = arith.constant 0 : i32
    return %c0_i32, %c0_i32_0 : i32, i32
  }
  func.func @transform_3(%arg0: i32) -> (i32, i32) {
    %c0_i32 = arith.constant 0 : i32
    %c0_i32_0 = arith.constant 0 : i32
    %c0_i32_1 = arith.constant 0 : i32
    return %c0_i32, %c0_i32_0 : i32, i32
  }
  func.func @transform_4(%arg0: i32) -> (i32, i32) {
    %c0_i32 = arith.constant 0 : i32
    %c0_i32_0 = arith.constant 0 : i32
    %c0_i32_1 = arith.constant 0 : i32
    return %c0_i32, %c0_i32_0 : i32, i32
  }
  func.func @transform_5(%arg0: i32) -> (i32, i32) {
    %c0_i32 = arith.constant 0 : i32
    %c0_i32_0 = arith.constant 0 : i32
    %c0_i32_1 = arith.constant 0 : i32
    return %c0_i32, %c0_i32_0 : i32, i32
  }
  func.func @transform_6(%arg0: i32) -> (i32, i32) {
    %c0_i32 = arith.constant 0 : i32
    %c0_i32_0 = arith.constant 0 : i32
    %c0_i32_1 = arith.constant 0 : i32
    return %c0_i32, %c0_i32_0 : i32, i32
  }
  func.func @transform_7(%arg0: i32) -> (i32, i32) {
    %c0_i32 = arith.constant 0 : i32
    %c0_i32_0 = arith.constant 0 : i32
    return %arg0, %c0_i32 : i32, i32
  }
}

</mosaic_0001>

<llo_original>
// kernel: tpu_custom_call.1
$region0: #{tpu_custom_call.1}
  #allocation0 [shape = 'u32[]', space=smem, size = 0x4, offset = 0x4, fixed_abs, tag = 'smem constant byte address 0x4 - core index']
  #allocation1 [shape = 'u32[144,128]{1,0:T(1,128)}', space=vmem, size = 0x12000, scoped, tag = 'internal scratch']
  #allocation2 [shape = 'f32[1,1]{1,0:T(1,128)S(6)}', space=smem, size = 0x200, scoped, tag = 'scoped memory for tpu_custom_call.1']
  %s0 = inlined_call_operand.vmem [shape: f32[256,10], index: 0, kind: input, shape index: {}]
  %s1 = inlined_call_operand.vmem [shape: bf16[10,128], index: 1, kind: input, shape index: {}]
  %s2 = inlined_call_operand.vmem [shape: f32[1,128], index: 2, kind: input, shape index: {}]
  %s3 = inlined_call_operand.vmem [shape: bf16[128,128], index: 3, kind: input, shape index: {}]
  %s4 = inlined_call_operand.vmem [shape: f32[1,128], index: 4, kind: input, shape index: {}]
  %s5 = inlined_call_operand.vmem [shape: bf16[128,1], index: 5, kind: input, shape index: {}]
  %s6 = inlined_call_operand.<no memory space> [shape: f32[1,1], index: 6, kind: input, shape index: {}]
  %s7 = inlined_call_operand.vmem [shape: f32[256,1], index: 7, kind: output, shape index: {}]
  %s8 = sld [smem:[#allocation0]]
  $region38: #{tpu_custom_call.1} parent=0
    _
  %s10 = ssub.s32 1, %s8
  %s11 = scalar_select 0, %s10, %s8
  %12 = sst [smem:[#allocation2]] %s6
  // Predicated region
  $region2: #{tpu_custom_call.1} parent=0 // pred_check
    _
  $region3: #{tpu_custom_call.1} parent=0 // pred_check_branch
    %14 = sbr.rel (0) target = $region5
  $region4: #{tpu_custom_call.1} parent=0 // pred_region
    _
  $region5: #{tpu_custom_call.1} parent=0 // pred_fallthru
    _
  // Predicated region
  $region6: #{tpu_custom_call.1} parent=0 // pred_check
    _
  $region7: #{tpu_custom_call.1} parent=0 // pred_check_branch
    %16 = sbr.rel (0) target = $region9
  $region8: #{tpu_custom_call.1} parent=0 // pred_region
    _
  $region9: #{tpu_custom_call.1} parent=0 // pred_fallthru
    _
  // Predicated region
  $region10: #{tpu_custom_call.1} parent=0 // pred_check
    _
  $region11: #{tpu_custom_call.1} parent=0 // pred_check_branch
    %18 = sbr.rel (0) target = $region13
  $region12: #{tpu_custom_call.1} parent=0 // pred_region
    _
  $region13: #{tpu_custom_call.1} parent=0 // pred_fallthru
    _
  // Predicated region
  $region14: #{tpu_custom_call.1} parent=0 // pred_check
    _
  $region15: #{tpu_custom_call.1} parent=0 // pred_check_branch
    %20 = sbr.rel (0) target = $region17
  $region16: #{tpu_custom_call.1} parent=0 // pred_region
    _
  $region17: #{tpu_custom_call.1} parent=0 // pred_fallthru
    _
  // Predicated region
  $region18: #{tpu_custom_call.1} parent=0 // pred_check
    _
  $region19: #{tpu_custom_call.1} parent=0 // pred_check_branch
    %22 = sbr.rel (0) target = $region21
  $region20: #{tpu_custom_call.1} parent=0 // pred_region
    _
  $region21: #{tpu_custom_call.1} parent=0 // pred_fallthru
    _
  // Predicated region
  $region22: #{tpu_custom_call.1} parent=0 // pred_check
    _
  $region23: #{tpu_custom_call.1} parent=0 // pred_check_branch
    %24 = sbr.rel (0) target = $region25
  $region24: #{tpu_custom_call.1} parent=0 // pred_region
    _
  $region25: #{tpu_custom_call.1} parent=0 // pred_fallthru
    _
  // Predicated region
  $region26: #{tpu_custom_call.1} parent=0 // pred_check
    _
  $region27: #{tpu_custom_call.1} parent=0 // pred_check_branch
    %26 = sbr.rel (0) target = $region29
  $region28: #{tpu_custom_call.1} parent=0 // pred_region
    _
  $region29: #{tpu_custom_call.1} parent=0 // pred_fallthru
    _
  %v28 = vld [vmem:[%s0] sm:$0xff]
  %v29 = vld [vmem:[%s0 + $0x8] sm:$0xff]
  %v30 = vld [vmem:[%s0 + $0x10] sm:$0xff]
  %v31 = vld [vmem:[%s0 + $0x18] sm:$0xff]
  %v32 = vld [vmem:[%s0 + $0x20] sm:$0xff]
  %v33 = vld [vmem:[%s0 + $0x28] sm:$0xff]
  %v34 = vld [vmem:[%s0 + $0x30] sm:$0xff]
  %v35 = vld [vmem:[%s0 + $0x38] sm:$0xff]
  %v36 = vld [vmem:[%s0 + $0x40] sm:$0xff]
  %v37 = vld [vmem:[%s0 + $0x48] sm:$0xff]
  %v38 = vld [vmem:[%s0 + $0x50] sm:$0xff]
  %v39 = vld [vmem:[%s0 + $0x58] sm:$0xff]
  %v40 = vld [vmem:[%s0 + $0x60] sm:$0xff]
  %v41 = vld [vmem:[%s0 + $0x68] sm:$0xff]
  %v42 = vld [vmem:[%s0 + $0x70] sm:$0xff]
  %v43 = vld [vmem:[%s0 + $0x78] sm:$0xff]
  %v44 = vld [vmem:[%s0 + $0x80] sm:$0xff]
  %v45 = vld [vmem:[%s0 + $0x88] sm:$0xff]
  %v46 = vld [vmem:[%s0 + $0x90] sm:$0xff]
  %v47 = vld [vmem:[%s0 + $0x98] sm:$0xff]
  %v48 = vld [vmem:[%s0 + $0xa0] sm:$0xff]
  %v49 = vld [vmem:[%s0 + $0xa8] sm:$0xff]
  %v50 = vld [vmem:[%s0 + $0xb0] sm:$0xff]
  %v51 = vld [vmem:[%s0 + $0xb8] sm:$0xff]
  %v52 = vld [vmem:[%s0 + $0xc0] sm:$0xff]
  %v53 = vld [vmem:[%s0 + $0xc8] sm:$0xff]
  %v54 = vld [vmem:[%s0 + $0xd0] sm:$0xff]
  %v55 = vld [vmem:[%s0 + $0xd8] sm:$0xff]
  %v56 = vld [vmem:[%s0 + $0xe0] sm:$0xff]
  %v57 = vld [vmem:[%s0 + $0xe8] sm:$0xff]
  %v58 = vld [vmem:[%s0 + $0xf0] sm:$0xff]
  %v59 = vld [vmem:[%s0 + $0xf8] sm:$0xff]
  %v60 = vpack.c.bf16 %v29, %v28
  %v61 = vpack.c.bf16 %v31, %v30
  %v62 = vpack.c.bf16 %v33, %v32
  %v63 = vpack.c.bf16 %v35, %v34
  %v64 = vpack.c.bf16 %v37, %v36
  %v65 = vpack.c.bf16 %v39, %v38
  %v66 = vpack.c.bf16 %v41, %v40
  %v67 = vpack.c.bf16 %v43, %v42
  %v68 = vpack.c.bf16 %v45, %v44
  %v69 = vpack.c.bf16 %v47, %v46
  %v70 = vpack.c.bf16 %v49, %v48
  %v71 = vpack.c.bf16 %v51, %v50
  %v72 = vpack.c.bf16 %v53, %v52
  %v73 = vpack.c.bf16 %v55, %v54
  %v74 = vpack.c.bf16 %v57, %v56
  %v75 = vpack.c.bf16 %v59, %v58
  %v76 = vld [vmem:[%s1] sm:$0xf]
  %v77 = vld [vmem:[%s1 + $0x4] sm:$0x1]
  %v78 = vld [vmem:[%s2] sm:$0x1]
  %v80 = vlaneseq
  %v81 = vshrl.u32 %v80, 7
  %v82 = vsub.s32 0, %v81
  %v83 = vrot.slane %v78, %v82
  %v87 = vunpack.c.l.b16 %v76
  %v88 = vunpack.c.l.b16 %v77
  %v89 = vpack.c.b16 %v88, %v87
  %vm90 = vcmask 80896
  %v92 = vsel %vm90, %v60, 0
  %v95 = vsel %vm90, %v61, 0
  %v98 = vsel %vm90, %v62, 0
  %v101 = vsel %vm90, %v63, 0
  %v104 = vsel %vm90, %v64, 0
  %v107 = vsel %vm90, %v65, 0
  %v110 = vsel %vm90, %v66, 0
  %v113 = vsel %vm90, %v67, 0
  %v116 = vsel %vm90, %v68, 0
  %v119 = vsel %vm90, %v69, 0
  %v122 = vsel %vm90, %v70, 0
  %v125 = vsel %vm90, %v71, 0
  %v128 = vsel %vm90, %v72, 0
  %v131 = vsel %vm90, %v73, 0
  %v134 = vsel %vm90, %v74, 0
  %v137 = vsel %vm90, %v75, 0
  %vm139 = vcmask 1044480
  %v141 = vsel %vm139, %v89, 0
  %143 = vmatprep.subr.bf16.mxu0 0
  %144 = vmatpush1.bf16.msra.mxu0 %v141
  %145 = vmatprep.subr.bf16.mxu0 0
  %146 = vmatpush1.bf16.msra.mxu0 0
  %147 = vmatprep.subr.bf16.mxu0 0
  %148 = vmatpush1.bf16.msra.mxu0 0
  %149 = vmatprep.subr.bf16.mxu0 0
  %150 = vmatpush1.bf16.msra.mxu0 0
  %151 = vmatprep.subr.bf16.mxu0 0
  %152 = vmatpush1.bf16.msra.mxu0 0
  %153 = vmatprep.subr.bf16.mxu0 0
  %154 = vmatpush1.bf16.msra.mxu0 0
  %155 = vmatprep.subr.bf16.mxu0 0
  %156 = vmatpush1.bf16.msra.mxu0 0
  %157 = vmatprep.subr.bf16.mxu0 0
  %158 = vmatpush1.bf16.msra.mxu0 0
  %159 = vmatprep.subr.bf16.mxu0 0
  %160 = vmatpush1.bf16.msra.mxu0 0
  %161 = vmatprep.subr.bf16.mxu0 0
  %162 = vmatpush1.bf16.msra.mxu0 0
  %163 = vmatprep.subr.bf16.mxu0 0
  %164 = vmatpush1.bf16.msra.mxu0 0
  %165 = vmatprep.subr.bf16.mxu0 0
  %166 = vmatpush1.bf16.msra.mxu0 0
  %167 = vmatprep.subr.bf16.mxu0 0
  %168 = vmatpush1.bf16.msra.mxu0 0
  %169 = vmatprep.subr.bf16.mxu0 0
  %170 = vmatpush1.bf16.msra.mxu0 0
  %171 = vmatprep.subr.bf16.mxu0 0
  %172 = vmatpush1.bf16.msra.mxu0 0
  %173 = vmatprep.subr.bf16.mxu0 0
  %174 = vmatpush1.bf16.msra.mxu0 0
  %175 = vmatprep.mubr.bf16.mxu0 0
  %176 = vmatmul.mubr.bf16.gmra.mrb[0].mxu0 %v92
  %v177 = vpop.f32.mrb[0].mxu0
  %v178 = vadd.f32 %v83, %v177
  %v179 = vpop.f32.mrb[0].mxu0
  %v180 = vpop.f32.mrb[0].mxu0
  %v181 = vadd.f32 %v83, %v180
  %v182 = vpop.f32.mrb[0].mxu0
  %183 = vmatprep.mubr.bf16.mxu0 0
  %184 = vmatmul.mubr.bf16.gmra.mrb[0].mxu0 %v95
  %v185 = vpop.f32.mrb[0].mxu0
  %v186 = vadd.f32 %v83, %v185
  %v187 = vpop.f32.mrb[0].mxu0
  %v188 = vpop.f32.mrb[0].mxu0
  %v189 = vadd.f32 %v83, %v188
  %v190 = vpop.f32.mrb[0].mxu0
  %191 = vmatprep.mubr.bf16.mxu0 0
  %192 = vmatmul.mubr.bf16.gmra.mrb[0].mxu0 %v98
  %v193 = vpop.f32.mrb[0].mxu0
  %v194 = vadd.f32 %v83, %v193
  %v195 = vpop.f32.mrb[0].mxu0
  %v196 = vpop.f32.mrb[0].mxu0
  %v197 = vadd.f32 %v83, %v196
  %v198 = vpop.f32.mrb[0].mxu0
  %199 = vmatprep.mubr.bf16.mxu0 0
  %200 = vmatmul.mubr.bf16.gmra.mrb[0].mxu0 %v101
  %v201 = vpop.f32.mrb[0].mxu0
  %v202 = vadd.f32 %v83, %v201
  %v203 = vpop.f32.mrb[0].mxu0
  %v204 = vpop.f32.mrb[0].mxu0
  %v205 = vadd.f32 %v83, %v204
  %v206 = vpop.f32.mrb[0].mxu0
  %207 = vmatprep.mubr.bf16.mxu0 0
  %208 = vmatmul.mubr.bf16.gmra.mrb[0].mxu0 %v104
  %v209 = vpop.f32.mrb[0].mxu0
  %v210 = vadd.f32 %v83, %v209
  %v211 = vpop.f32.mrb[0].mxu0
  %v212 = vpop.f32.mrb[0].mxu0
  %v213 = vadd.f32 %v83, %v212
  %v214 = vpop.f32.mrb[0].mxu0
  %215 = vmatprep.mubr.bf16.mxu0 0
  %216 = vmatmul.mubr.bf16.gmra.mrb[0].mxu0 %v107
  %v217 = vpop.f32.mrb[0].mxu0
  %v218 = vadd.f32 %v83, %v217
  %v219 = vpop.f32.mrb[0].mxu0
  %v220 = vpop.f32.mrb[0].mxu0
  %v221 = vadd.f32 %v83, %v220
  %v222 = vpop.f32.mrb[0].mxu0
  %223 = vmatprep.mubr.bf16.mxu0 0
  %224 = vmatmul.mubr.bf16.gmra.mrb[0].mxu0 %v110
  %v225 = vpop.f32.mrb[0].mxu0
  %v226 = vadd.f32 %v83, %v225
  %v227 = vpop.f32.mrb[0].mxu0
  %v228 = vpop.f32.mrb[0].mxu0
  %v229 = vadd.f32 %v83, %v228
  %v230 = vpop.f32.mrb[0].mxu0
  %231 = vmatprep.mubr.bf16.mxu0 0
  %232 = vmatmul.mubr.bf16.gmra.mrb[0].mxu0 %v113
  %v233 = vpop.f32.mrb[0].mxu0
  %v234 = vadd.f32 %v83, %v233
  %v235 = vpop.f32.mrb[0].mxu0
  %v236 = vpop.f32.mrb[0].mxu0
  %v237 = vadd.f32 %v83, %v236
  %v238 = vpop.f32.mrb[0].mxu0
  %239 = vmatprep.mubr.bf16.mxu0 0
  %240 = vmatmul.mubr.bf16.gmra.mrb[0].mxu0 %v116
  %v241 = vpop.f32.mrb[0].mxu0
  %v242 = vadd.f32 %v83, %v241
  %v243 = vpop.f32.mrb[0].mxu0
  %v244 = vpop.f32.mrb[0].mxu0
  %v245 = vadd.f32 %v83, %v244
  %v246 = vpop.f32.mrb[0].mxu0
  %247 = vmatprep.mubr.bf16.mxu0 0
  %248 = vmatmul.mubr.bf16.gmra.mrb[0].mxu0 %v119
  %v249 = vpop.f32.mrb[0].mxu0
  %v250 = vadd.f32 %v83, %v249
  %v251 = vpop.f32.mrb[0].mxu0
  %v252 = vpop.f32.mrb[0].mxu0
  %v253 = vadd.f32 %v83, %v252
  %v254 = vpop.f32.mrb[0].mxu0
  %255 = vmatprep.mubr.bf16.mxu0 0
  %256 = vmatmul.mubr.bf16.gmra.mrb[0].mxu0 %v122
  %v257 = vpop.f32.mrb[0].mxu0
  %v258 = vadd.f32 %v83, %v257
  %v259 = vpop.f32.mrb[0].mxu0
  %v260 = vpop.f32.mrb[0].mxu0
  %v261 = vadd.f32 %v83, %v260
  %v262 = vpop.f32.mrb[0].mxu0
  %263 = vmatprep.mubr.bf16.mxu0 0
  %264 = vmatmul.mubr.bf16.gmra.mrb[0].mxu0 %v125
  %v265 = vpop.f32.mrb[0].mxu0
  %v266 = vadd.f32 %v83, %v265
  %v267 = vpop.f32.mrb[0].mxu0
  %v268 = vpop.f32.mrb[0].mxu0
  %v269 = vadd.f32 %v83, %v268
  %v270 = vpop.f32.mrb[0].mxu0
  %271 = vmatprep.mubr.bf16.mxu0 0
  %272 = vmatmul.mubr.bf16.gmra.mrb[0].mxu0 %v128
  %v273 = vpop.f32.mrb[0].mxu0
  %v274 = vadd.f32 %v83, %v273
  %v275 = vpop.f32.mrb[0].mxu0
  %v276 = vpop.f32.mrb[0].mxu0
  %v277 = vadd.f32 %v83, %v276
  %v278 = vpop.f32.mrb[0].mxu0
  %279 = vmatprep.mubr.bf16.mxu0 0
  %280 = vmatmul.mubr.bf16.gmra.mrb[0].mxu0 %v131
  %v281 = vpop.f32.mrb[0].mxu0
  %v282 = vadd.f32 %v83, %v281
  %v283 = vpop.f32.mrb[0].mxu0
  %v284 = vpop.f32.mrb[0].mxu0
  %v285 = vadd.f32 %v83, %v284
  %v286 = vpop.f32.mrb[0].mxu0
  %287 = vmatprep.mubr.bf16.mxu0 0
  %288 = vmatmul.mubr.bf16.gmra.mrb[0].mxu0 %v134
  %v289 = vpop.f32.mrb[0].mxu0
  %v290 = vadd.f32 %v83, %v289
  %v291 = vpop.f32.mrb[0].mxu0
  %v292 = vpop.f32.mrb[0].mxu0
  %v293 = vadd.f32 %v83, %v292
  %v294 = vpop.f32.mrb[0].mxu0
  %295 = vmatprep.mubr.bf16.mxu0 0
  %296 = vmatmul.mubr.bf16.gmra.mrb[0].mxu0 %v137
  %v297 = vpop.f32.mrb[0].mxu0
  %v298 = vadd.f32 %v83, %v297
  %v299 = vpop.f32.mrb[0].mxu0
  %v300 = vpop.f32.mrb[0].mxu0
  %v301 = vadd.f32 %v83, %v300
  %v302 = vpop.f32.mrb[0].mxu0
  %303 = vdwg.mxu0
  %v304 = vmax.f32 %v178, 0.0
  %v305 = vmax.f32 %v181, 0.0
  %v306 = vmax.f32 %v186, 0.0
  %v307 = vmax.f32 %v189, 0.0
  %v308 = vmax.f32 %v194, 0.0
  %v309 = vmax.f32 %v197, 0.0
  %v310 = vmax.f32 %v202, 0.0
  %v311 = vmax.f32 %v205, 0.0
  %v312 = vmax.f32 %v210, 0.0
  %v313 = vmax.f32 %v213, 0.0
  %v314 = vmax.f32 %v218, 0.0
  %v315 = vmax.f32 %v221, 0.0
  %v316 = vmax.f32 %v226, 0.0
  %v317 = vmax.f32 %v229, 0.0
  %v318 = vmax.f32 %v234, 0.0
  %v319 = vmax.f32 %v237, 0.0
  %v320 = vmax.f32 %v242, 0.0
  %v321 = vmax.f32 %v245, 0.0
  %v322 = vmax.f32 %v250, 0.0
  %v323 = vmax.f32 %v253, 0.0
  %v324 = vmax.f32 %v258, 0.0
  %v325 = vmax.f32 %v261, 0.0
  %v326 = vmax.f32 %v266, 0.0
  %v327 = vmax.f32 %v269, 0.0
  %v328 = vmax.f32 %v274, 0.0
  %v329 = vmax.f32 %v277, 0.0
  %v330 = vmax.f32 %v282, 0.0
  %v331 = vmax.f32 %v285, 0.0
  %v332 = vmax.f32 %v290, 0.0
  %v333 = vmax.f32 %v293, 0.0
  %v334 = vmax.f32 %v298, 0.0
  %v335 = vmax.f32 %v301, 0.0
  %v336 = vpack.c.bf16 %v305, %v304
  %v337 = vpack.c.bf16 %v307, %v306
  %v338 = vpack.c.bf16 %v309, %v308
  %v339 = vpack.c.bf16 %v311, %v310
  %v340 = vpack.c.bf16 %v313, %v312
  %v341 = vpack.c.bf16 %v315, %v314
  %v342 = vpack.c.bf16 %v317, %v316
  %v343 = vpack.c.bf16 %v319, %v318
  %v344 = vpack.c.bf16 %v321, %v320
  %v345 = vpack.c.bf16 %v323, %v322
  %v346 = vpack.c.bf16 %v325, %v324
  %v347 = vpack.c.bf16 %v327, %v326
  %v348 = vpack.c.bf16 %v329, %v328
  %v349 = vpack.c.bf16 %v331, %v330
  %v350 = vpack.c.bf16 %v333, %v332
  %v351 = vpack.c.bf16 %v335, %v334
  %v352 = vld [vmem:[%s3] sm:$0xf]
  %v353 = vld [vmem:[%s3 + $0x4] sm:$0xf]
  %v354 = vld [vmem:[%s3 + $0x8] sm:$0xf]
  %v355 = vld [vmem:[%s3 + $0xc] sm:$0xf]
  %v356 = vld [vmem:[%s3 + $0x10] sm:$0xf]
  %v357 = vld [vmem:[%s3 + $0x14] sm:$0xf]
  %v358 = vld [vmem:[%s3 + $0x18] sm:$0xf]
  %v359 = vld [vmem:[%s3 + $0x1c] sm:$0xf]
  %v360 = vld [vmem:[%s3 + $0x20] sm:$0xf]
  %v361 = vld [vmem:[%s3 + $0x24] sm:$0xf]
  %v362 = vld [vmem:[%s3 + $0x28] sm:$0xf]
  %v363 = vld [vmem:[%s3 + $0x2c] sm:$0xf]
  %v364 = vld [vmem:[%s3 + $0x30] sm:$0xf]
  %v365 = vld [vmem:[%s3 + $0x34] sm:$0xf]
  %v366 = vld [vmem:[%s3 + $0x38] sm:$0xf]
  %v367 = vld [vmem:[%s3 + $0x3c] sm:$0xf]
  %v368 = vld [vmem:[%s4] sm:$0x1]
  %v370 = vlaneseq
  %v371 = vshrl.u32 %v370, 7
  %v372 = vsub.s32 0, %v371
  %v373 = vrot.slane %v368, %v372
  %v391 = vunpack.c.l.b16 %v352
  %v392 = vunpack.c.l.b16 %v353
  %v393 = vunpack.c.l.b16 %v354
  %v394 = vunpack.c.l.b16 %v355
  %v395 = vunpack.c.l.b16 %v356
  %v396 = vunpack.c.l.b16 %v357
  %v397 = vunpack.c.l.b16 %v358
  %v398 = vunpack.c.l.b16 %v359
  %v399 = vunpack.c.l.b16 %v360
  %v400 = vunpack.c.l.b16 %v361
  %v401 = vunpack.c.l.b16 %v362
  %v402 = vunpack.c.l.b16 %v363
  %v403 = vunpack.c.l.b16 %v364
  %v404 = vunpack.c.l.b16 %v365
  %v405 = vunpack.c.l.b16 %v366
  %v406 = vunpack.c.l.b16 %v367
  %v407 = vpack.c.b16 %v392, %v391
  %v408 = vpack.c.b16 %v394, %v393
  %v409 = vpack.c.b16 %v396, %v395
  %v410 = vpack.c.b16 %v398, %v397
  %v411 = vpack.c.b16 %v400, %v399
  %v412 = vpack.c.b16 %v402, %v401
  %v413 = vpack.c.b16 %v404, %v403
  %v414 = vpack.c.b16 %v406, %v405
  %423 = vmatprep.subr.bf16.mxu0 0
  %424 = vmatpush1.bf16.msra.mxu0 %v407
  %425 = vmatprep.subr.bf16.mxu0 0
  %426 = vmatpush1.bf16.msra.mxu0 %v408
  %427 = vmatprep.subr.bf16.mxu0 0
  %428 = vmatpush1.bf16.msra.mxu0 %v409
  %429 = vmatprep.subr.bf16.mxu0 0
  %430 = vmatpush1.bf16.msra.mxu0 %v410
  %431 = vmatprep.subr.bf16.mxu0 0
  %432 = vmatpush1.bf16.msra.mxu0 %v411
  %433 = vmatprep.subr.bf16.mxu0 0
  %434 = vmatpush1.bf16.msra.mxu0 %v412
  %435 = vmatprep.subr.bf16.mxu0 0
  %436 = vmatpush1.bf16.msra.mxu0 %v413
  %437 = vmatprep.subr.bf16.mxu0 0
  %438 = vmatpush1.bf16.msra.mxu0 %v414
  %439 = vmatprep.subr.bf16.mxu0 0
  %440 = vmatpush1.bf16.msra.mxu0 0
  %441 = vmatprep.subr.bf16.mxu0 0
  %442 = vmatpush1.bf16.msra.mxu0 0
  %443 = vmatprep.subr.bf16.mxu0 0
  %444 = vmatpush1.bf16.msra.mxu0 0
  %445 = vmatprep.subr.bf16.mxu0 0
  %446 = vmatpush1.bf16.msra.mxu0 0
  %447 = vmatprep.subr.bf16.mxu0 0
  %448 = vmatpush1.bf16.msra.mxu0 0
  %449 = vmatprep.subr.bf16.mxu0 0
  %450 = vmatpush1.bf16.msra.mxu0 0
  %451 = vmatprep.subr.bf16.mxu0 0
  %452 = vmatpush1.bf16.msra.mxu0 0
  %453 = vmatprep.subr.bf16.mxu0 0
  %454 = vmatpush1.bf16.msra.mxu0 0
  %455 = vmatprep.mubr.bf16.mxu0 0
  %456 = vmatmul.mubr.bf16.gmra.mrb[0].mxu0 %v336
  %v457 = vpop.f32.mrb[0].mxu0
  %v458 = vadd.f32 %v373, %v457
  %v459 = vpop.f32.mrb[0].mxu0
  %v460 = vpop.f32.mrb[0].mxu0
  %v461 = vadd.f32 %v373, %v460
  %v462 = vpop.f32.mrb[0].mxu0
  %463 = vmatprep.mubr.bf16.mxu0 0
  %464 = vmatmul.mubr.bf16.gmra.mrb[0].mxu0 %v337
  %v465 = vpop.f32.mrb[0].mxu0
  %v466 = vadd.f32 %v373, %v465
  %v467 = vpop.f32.mrb[0].mxu0
  %v468 = vpop.f32.mrb[0].mxu0
  %v469 = vadd.f32 %v373, %v468
  %v470 = vpop.f32.mrb[0].mxu0
  %471 = vmatprep.mubr.bf16.mxu0 0
  %472 = vmatmul.mubr.bf16.gmra.mrb[0].mxu0 %v338
  %v473 = vpop.f32.mrb[0].mxu0
  %v474 = vadd.f32 %v373, %v473
  %v475 = vpop.f32.mrb[0].mxu0
  %v476 = vpop.f32.mrb[0].mxu0
  %v477 = vadd.f32 %v373, %v476
  %v478 = vpop.f32.mrb[0].mxu0
  %479 = vmatprep.mubr.bf16.mxu0 0
  %480 = vmatmul.mubr.bf16.gmra.mrb[0].mxu0 %v339
  %v481 = vpop.f32.mrb[0].mxu0
  %v482 = vadd.f32 %v373, %v481
  %v483 = vpop.f32.mrb[0].mxu0
  %v484 = vpop.f32.mrb[0].mxu0
  %v485 = vadd.f32 %v373, %v484
  %v486 = vpop.f32.mrb[0].mxu0
  %487 = vmatprep.mubr.bf16.mxu0 0
  %488 = vmatmul.mubr.bf16.gmra.mrb[0].mxu0 %v340
  %v489 = vpop.f32.mrb[0].mxu0
  %v490 = vadd.f32 %v373, %v489
  %v491 = vpop.f32.mrb[0].mxu0
  %v492 = vpop.f32.mrb[0].mxu0
  %v493 = vadd.f32 %v373, %v492
  %v494 = vpop.f32.mrb[0].mxu0
  %495 = vmatprep.mubr.bf16.mxu0 0
  %496 = vmatmul.mubr.bf16.gmra.mrb[0].mxu0 %v341
  %v497 = vpop.f32.mrb[0].mxu0
  %v498 = vadd.f32 %v373, %v497
  %v499 = vpop.f32.mrb[0].mxu0
  %v500 = vpop.f32.mrb[0].mxu0
  %v501 = vadd.f32 %v373, %v500
  %v502 = vpop.f32.mrb[0].mxu0
  %503 = vmatprep.mubr.bf16.mxu0 0
  %504 = vmatmul.mubr.bf16.gmra.mrb[0].mxu0 %v342
  %v505 = vpop.f32.mrb[0].mxu0
  %v506 = vadd.f32 %v373, %v505
  %v507 = vpop.f32.mrb[0].mxu0
  %v508 = vpop.f32.mrb[0].mxu0
  %v509 = vadd.f32 %v373, %v508
  %v510 = vpop.f32.mrb[0].mxu0
  %511 = vmatprep.mubr.bf16.mxu0 0
  %512 = vmatmul.mubr.bf16.gmra.mrb[0].mxu0 %v343
  %v513 = vpop.f32.mrb[0].mxu0
  %v514 = vadd.f32 %v373, %v513
  %v515 = vpop.f32.mrb[0].mxu0
  %v516 = vpop.f32.mrb[0].mxu0
  %v517 = vadd.f32 %v373, %v516
  %v518 = vpop.f32.mrb[0].mxu0
  %519 = vmatprep.mubr.bf16.mxu0 0
  %520 = vmatmul.mubr.bf16.gmra.mrb[0].mxu0 %v344
  %v521 = vpop.f32.mrb[0].mxu0
  %v522 = vadd.f32 %v373, %v521
  %v523 = vpop.f32.mrb[0].mxu0
  %v524 = vpop.f32.mrb[0].mxu0
  %v525 = vadd.f32 %v373, %v524
  %v526 = vpop.f32.mrb[0].mxu0
  %527 = vmatprep.mubr.bf16.mxu0 0
  %528 = vmatmul.mubr.bf16.gmra.mrb[0].mxu0 %v345
  %v529 = vpop.f32.mrb[0].mxu0
  %v530 = vadd.f32 %v373, %v529
  %v531 = vpop.f32.mrb[0].mxu0
  %v532 = vpop.f32.mrb[0].mxu0
  %v533 = vadd.f32 %v373, %v532
  %v534 = vpop.f32.mrb[0].mxu0
  %535 = vmatprep.mubr.bf16.mxu0 0
  %536 = vmatmul.mubr.bf16.gmra.mrb[0].mxu0 %v346
  %v537 = vpop.f32.mrb[0].mxu0
  %v538 = vadd.f32 %v373, %v537
  %v539 = vpop.f32.mrb[0].mxu0
  %v540 = vpop.f32.mrb[0].mxu0
  %v541 = vadd.f32 %v373, %v540
  %v542 = vpop.f32.mrb[0].mxu0
  %543 = vmatprep.mubr.bf16.mxu0 0
  %544 = vmatmul.mubr.bf16.gmra.mrb[0].mxu0 %v347
  %v545 = vpop.f32.mrb[0].mxu0
  %v546 = vadd.f32 %v373, %v545
  %v547 = vpop.f32.mrb[0].mxu0
  %v548 = vpop.f32.mrb[0].mxu0
  %v549 = vadd.f32 %v373, %v548
  %v550 = vpop.f32.mrb[0].mxu0
  %551 = vmatprep.mubr.bf16.mxu0 0
  %552 = vmatmul.mubr.bf16.gmra.mrb[0].mxu0 %v348
  %v553 = vpop.f32.mrb[0].mxu0
  %v554 = vadd.f32 %v373, %v553
  %v555 = vpop.f32.mrb[0].mxu0
  %v556 = vpop.f32.mrb[0].mxu0
  %v557 = vadd.f32 %v373, %v556
  %v558 = vpop.f32.mrb[0].mxu0
  %559 = vmatprep.mubr.bf16.mxu0 0
  %560 = vmatmul.mubr.bf16.gmra.mrb[0].mxu0 %v349
  %v561 = vpop.f32.mrb[0].mxu0
  %v562 = vadd.f32 %v373, %v561
  %v563 = vpop.f32.mrb[0].mxu0
  %v564 = vpop.f32.mrb[0].mxu0
  %v565 = vadd.f32 %v373, %v564
  %v566 = vpop.f32.mrb[0].mxu0
  %567 = vmatprep.mubr.bf16.mxu0 0
  %568 = vmatmul.mubr.bf16.gmra.mrb[0].mxu0 %v350
  %v569 = vpop.f32.mrb[0].mxu0
  %v570 = vadd.f32 %v373, %v569
  %v571 = vpop.f32.mrb[0].mxu0
  %v572 = vpop.f32.mrb[0].mxu0
  %v573 = vadd.f32 %v373, %v572
  %v574 = vpop.f32.mrb[0].mxu0
  %575 = vmatprep.mubr.bf16.mxu0 0
  %576 = vmatmul.mubr.bf16.gmra.mrb[0].mxu0 %v351
  %v577 = vpop.f32.mrb[0].mxu0
  %v578 = vadd.f32 %v373, %v577
  %v579 = vpop.f32.mrb[0].mxu0
  %v580 = vpop.f32.mrb[0].mxu0
  %v581 = vadd.f32 %v373, %v580
  %v582 = vpop.f32.mrb[0].mxu0
  %583 = vdwg.mxu0
  %v584 = vmax.f32 %v458, 0.0
  %v585 = vmax.f32 %v461, 0.0
  %v586 = vmax.f32 %v466, 0.0
  %v587 = vmax.f32 %v469, 0.0
  %v588 = vmax.f32 %v474, 0.0
  %v589 = vmax.f32 %v477, 0.0
  %v590 = vmax.f32 %v482, 0.0
  %v591 = vmax.f32 %v485, 0.0
  %v592 = vmax.f32 %v490, 0.0
  %v593 = vmax.f32 %v493, 0.0
  %v594 = vmax.f32 %v498, 0.0
  %v595 = vmax.f32 %v501, 0.0
  %v596 = vmax.f32 %v506, 0.0
  %v597 = vmax.f32 %v509, 0.0
  %v598 = vmax.f32 %v514, 0.0
  %v599 = vmax.f32 %v517, 0.0
  %v600 = vmax.f32 %v522, 0.0
  %v601 = vmax.f32 %v525, 0.0
  %v602 = vmax.f32 %v530, 0.0
  %v603 = vmax.f32 %v533, 0.0
  %v604 = vmax.f32 %v538, 0.0
  %v605 = vmax.f32 %v541, 0.0
  %v606 = vmax.f32 %v546, 0.0
  %v607 = vmax.f32 %v549, 0.0
  %v608 = vmax.f32 %v554, 0.0
  %v609 = vmax.f32 %v557, 0.0
  %v610 = vmax.f32 %v562, 0.0
  %v611 = vmax.f32 %v565, 0.0
  %v612 = vmax.f32 %v570, 0.0
  %v613 = vmax.f32 %v573, 0.0
  %v614 = vmax.f32 %v578, 0.0
  %v615 = vmax.f32 %v581, 0.0
  %v616 = vpack.c.bf16 %v585, %v584
  %v617 = vpack.c.bf16 %v587, %v586
  %v618 = vpack.c.bf16 %v589, %v588
  %v619 = vpack.c.bf16 %v591, %v590
  %v620 = vpack.c.bf16 %v593, %v592
  %v621 = vpack.c.bf16 %v595, %v594
  %v622 = vpack.c.bf16 %v597, %v596
  %v623 = vpack.c.bf16 %v599, %v598
  %v624 = vpack.c.bf16 %v601, %v600
  %v625 = vpack.c.bf16 %v603, %v602
  %v626 = vpack.c.bf16 %v605, %v604
  %v627 = vpack.c.bf16 %v607, %v606
  %v628 = vpack.c.bf16 %v609, %v608
  %v629 = vpack.c.bf16 %v611, %v610
  %v630 = vpack.c.bf16 %v613, %v612
  %v631 = vpack.c.bf16 %v615, %v614
  %v632 = vld [vmem:[%s5] sm:$0xf]
  %v633 = vld [vmem:[%s5 + $0x4] sm:$0xf]
  %v634 = vld [vmem:[%s5 + $0x8] sm:$0xf]
  %v635 = vld [vmem:[%s5 + $0xc] sm:$0xf]
  %v636 = vld [vmem:[%s5 + $0x10] sm:$0xf]
  %v637 = vld [vmem:[%s5 + $0x14] sm:$0xf]
  %v638 = vld [vmem:[%s5 + $0x18] sm:$0xf]
  %v639 = vld [vmem:[%s5 + $0x1c] sm:$0xf]
  %v640 = vld [vmem:[%s5 + $0x20] sm:$0xf]
  %v641 = vld [vmem:[%s5 + $0x24] sm:$0xf]
  %v642 = vld [vmem:[%s5 + $0x28] sm:$0xf]
  %v643 = vld [vmem:[%s5 + $0x2c] sm:$0xf]
  %v644 = vld [vmem:[%s5 + $0x30] sm:$0xf]
  %v645 = vld [vmem:[%s5 + $0x34] sm:$0xf]
  %v646 = vld [vmem:[%s5 + $0x38] sm:$0xf]
  %v647 = vld [vmem:[%s5 + $0x3c] sm:$0xf]
  %s648 = sld [smem:[#allocation2]]
  %v649 = vstv %s648
  %v666 = vunpack.c.l.b16 %v632
  %v667 = vunpack.c.l.b16 %v633
  %v668 = vunpack.c.l.b16 %v634
  %v669 = vunpack.c.l.b16 %v635
  %v670 = vunpack.c.l.b16 %v636
  %v671 = vunpack.c.l.b16 %v637
  %v672 = vunpack.c.l.b16 %v638
  %v673 = vunpack.c.l.b16 %v639
  %v674 = vunpack.c.l.b16 %v640
  %v675 = vunpack.c.l.b16 %v641
  %v676 = vunpack.c.l.b16 %v642
  %v677 = vunpack.c.l.b16 %v643
  %v678 = vunpack.c.l.b16 %v644
  %v679 = vunpack.c.l.b16 %v645
  %v680 = vunpack.c.l.b16 %v646
  %v681 = vunpack.c.l.b16 %v647
  %v682 = vpack.c.b16 %v667, %v666
  %v683 = vpack.c.b16 %v669, %v668
  %v684 = vpack.c.b16 %v671, %v670
  %v685 = vpack.c.b16 %v673, %v672
  %v686 = vpack.c.b16 %v675, %v674
  %v687 = vpack.c.b16 %v677, %v676
  %v688 = vpack.c.b16 %v679, %v678
  %v689 = vpack.c.b16 %v681, %v680
  %698 = vmatprep.subr.bf16.mxu0 0
  %699 = vmatpush1.bf16.msra.mxu0 %v682
  %700 = vmatprep.subr.bf16.mxu0 0
  %701 = vmatpush1.bf16.msra.mxu0 %v683
  %702 = vmatprep.subr.bf16.mxu0 0
  %703 = vmatpush1.bf16.msra.mxu0 %v684
  %704 = vmatprep.subr.bf16.mxu0 0
  %705 = vmatpush1.bf16.msra.mxu0 %v685
  %706 = vmatprep.subr.bf16.mxu0 0
  %707 = vmatpush1.bf16.msra.mxu0 %v686
  %708 = vmatprep.subr.bf16.mxu0 0
  %709 = vmatpush1.bf16.msra.mxu0 %v687
  %710 = vmatprep.subr.bf16.mxu0 0
  %711 = vmatpush1.bf16.msra.mxu0 %v688
  %712 = vmatprep.subr.bf16.mxu0 0
  %713 = vmatpush1.bf16.msra.mxu0 %v689
  %714 = vmatprep.subr.bf16.mxu0 0
  %715 = vmatpush1.bf16.msra.mxu0 0
  %716 = vmatprep.subr.bf16.mxu0 0
  %717 = vmatpush1.bf16.msra.mxu0 0
  %718 = vmatprep.subr.bf16.mxu0 0
  %719 = vmatpush1.bf16.msra.mxu0 0
  %720 = vmatprep.subr.bf16.mxu0 0
  %721 = vmatpush1.bf16.msra.mxu0 0
  %722 = vmatprep.subr.bf16.mxu0 0
  %723 = vmatpush1.bf16.msra.mxu0 0
  %724 = vmatprep.subr.bf16.mxu0 0
  %725 = vmatpush1.bf16.msra.mxu0 0
  %726 = vmatprep.subr.bf16.mxu0 0
  %727 = vmatpush1.bf16.msra.mxu0 0
  %728 = vmatprep.subr.bf16.mxu0 0
  %729 = vmatpush1.bf16.msra.mxu0 0
  %730 = vmatprep.mubr.bf16.mxu0 0
  %731 = vmatmul.mubr.bf16.gmra.mrb[0].mxu0 %v616
  %v732 = vpop.f32.mrb[0].mxu0
  %v733 = vadd.f32 %v649, %v732
  %v734 = vpop.f32.mrb[0].mxu0
  %v735 = vpop.f32.mrb[0].mxu0
  %v736 = vadd.f32 %v649, %v735
  %v737 = vpop.f32.mrb[0].mxu0
  %738 = vmatprep.mubr.bf16.mxu0 0
  %739 = vmatmul.mubr.bf16.gmra.mrb[0].mxu0 %v617
  %v740 = vpop.f32.mrb[0].mxu0
  %v741 = vadd.f32 %v649, %v740
  %v742 = vpop.f32.mrb[0].mxu0
  %v743 = vpop.f32.mrb[0].mxu0
  %v744 = vadd.f32 %v649, %v743
  %v745 = vpop.f32.mrb[0].mxu0
  %746 = vmatprep.mubr.bf16.mxu0 0
  %747 = vmatmul.mubr.bf16.gmra.mrb[0].mxu0 %v618
  %v748 = vpop.f32.mrb[0].mxu0
  %v749 = vadd.f32 %v649, %v748
  %v750 = vpop.f32.mrb[0].mxu0
  %v751 = vpop.f32.mrb[0].mxu0
  %v752 = vadd.f32 %v649, %v751
  %v753 = vpop.f32.mrb[0].mxu0
  %754 = vmatprep.mubr.bf16.mxu0 0
  %755 = vmatmul.mubr.bf16.gmra.mrb[0].mxu0 %v619
  %v756 = vpop.f32.mrb[0].mxu0
  %v757 = vadd.f32 %v649, %v756
  %v758 = vpop.f32.mrb[0].mxu0
  %v759 = vpop.f32.mrb[0].mxu0
  %v760 = vadd.f32 %v649, %v759
  %v761 = vpop.f32.mrb[0].mxu0
  %762 = vmatprep.mubr.bf16.mxu0 0
  %763 = vmatmul.mubr.bf16.gmra.mrb[0].mxu0 %v620
  %v764 = vpop.f32.mrb[0].mxu0
  %v765 = vadd.f32 %v649, %v764
  %v766 = vpop.f32.mrb[0].mxu0
  %v767 = vpop.f32.mrb[0].mxu0
  %v768 = vadd.f32 %v649, %v767
  %v769 = vpop.f32.mrb[0].mxu0
  %770 = vmatprep.mubr.bf16.mxu0 0
  %771 = vmatmul.mubr.bf16.gmra.mrb[0].mxu0 %v621
  %v772 = vpop.f32.mrb[0].mxu0
  %v773 = vadd.f32 %v649, %v772
  %v774 = vpop.f32.mrb[0].mxu0
  %v775 = vpop.f32.mrb[0].mxu0
  %v776 = vadd.f32 %v649, %v775
  %v777 = vpop.f32.mrb[0].mxu0
  %778 = vmatprep.mubr.bf16.mxu0 0
  %779 = vmatmul.mubr.bf16.gmra.mrb[0].mxu0 %v622
  %v780 = vpop.f32.mrb[0].mxu0
  %v781 = vadd.f32 %v649, %v780
  %v782 = vpop.f32.mrb[0].mxu0
  %v783 = vpop.f32.mrb[0].mxu0
  %v784 = vadd.f32 %v649, %v783
  %v785 = vpop.f32.mrb[0].mxu0
  %786 = vmatprep.mubr.bf16.mxu0 0
  %787 = vmatmul.mubr.bf16.gmra.mrb[0].mxu0 %v623
  %v788 = vpop.f32.mrb[0].mxu0
  %v789 = vadd.f32 %v649, %v788
  %v790 = vpop.f32.mrb[0].mxu0
  %v791 = vpop.f32.mrb[0].mxu0
  %v792 = vadd.f32 %v649, %v791
  %v793 = vpop.f32.mrb[0].mxu0
  %794 = vmatprep.mubr.bf16.mxu0 0
  %795 = vmatmul.mubr.bf16.gmra.mrb[0].mxu0 %v624
  %v796 = vpop.f32.mrb[0].mxu0
  %v797 = vadd.f32 %v649, %v796
  %v798 = vpop.f32.mrb[0].mxu0
  %v799 = vpop.f32.mrb[0].mxu0
  %v800 = vadd.f32 %v649, %v799
  %v801 = vpop.f32.mrb[0].mxu0
  %802 = vmatprep.mubr.bf16.mxu0 0
  %803 = vmatmul.mubr.bf16.gmra.mrb[0].mxu0 %v625
  %v804 = vpop.f32.mrb[0].mxu0
  %v805 = vadd.f32 %v649, %v804
  %v806 = vpop.f32.mrb[0].mxu0
  %v807 = vpop.f32.mrb[0].mxu0
  %v808 = vadd.f32 %v649, %v807
  %v809 = vpop.f32.mrb[0].mxu0
  %810 = vmatprep.mubr.bf16.mxu0 0
  %811 = vmatmul.mubr.bf16.gmra.mrb[0].mxu0 %v626
  %v812 = vpop.f32.mrb[0].mxu0
  %v813 = vadd.f32 %v649, %v812
  %v814 = vpop.f32.mrb[0].mxu0
  %v815 = vpop.f32.mrb[0].mxu0
  %v816 = vadd.f32 %v649, %v815
  %v817 = vpop.f32.mrb[0].mxu0
  %818 = vmatprep.mubr.bf16.mxu0 0
  %819 = vmatmul.mubr.bf16.gmra.mrb[0].mxu0 %v627
  %v820 = vpop.f32.mrb[0].mxu0
  %v821 = vadd.f32 %v649, %v820
  %v822 = vpop.f32.mrb[0].mxu0
  %v823 = vpop.f32.mrb[0].mxu0
  %v824 = vadd.f32 %v649, %v823
  %v825 = vpop.f32.mrb[0].mxu0
  %826 = vmatprep.mubr.bf16.mxu0 0
  %827 = vmatmul.mubr.bf16.gmra.mrb[0].mxu0 %v628
  %v828 = vpop.f32.mrb[0].mxu0
  %v829 = vadd.f32 %v649, %v828
  %v830 = vpop.f32.mrb[0].mxu0
  %v831 = vpop.f32.mrb[0].mxu0
  %v832 = vadd.f32 %v649, %v831
  %v833 = vpop.f32.mrb[0].mxu0
  %834 = vmatprep.mubr.bf16.mxu0 0
  %835 = vmatmul.mubr.bf16.gmra.mrb[0].mxu0 %v629
  %v836 = vpop.f32.mrb[0].mxu0
  %v837 = vadd.f32 %v649, %v836
  %v838 = vpop.f32.mrb[0].mxu0
  %v839 = vpop.f32.mrb[0].mxu0
  %v840 = vadd.f32 %v649, %v839
  %v841 = vpop.f32.mrb[0].mxu0
  %842 = vmatprep.mubr.bf16.mxu0 0
  %843 = vmatmul.mubr.bf16.gmra.mrb[0].mxu0 %v630
  %v844 = vpop.f32.mrb[0].mxu0
  %v845 = vadd.f32 %v649, %v844
  %v846 = vpop.f32.mrb[0].mxu0
  %v847 = vpop.f32.mrb[0].mxu0
  %v848 = vadd.f32 %v649, %v847
  %v849 = vpop.f32.mrb[0].mxu0
  %850 = vmatprep.mubr.bf16.mxu0 0
  %851 = vmatmul.mubr.bf16.gmra.mrb[0].mxu0 %v631
  %v852 = vpop.f32.mrb[0].mxu0
  %v853 = vadd.f32 %v649, %v852
  %v854 = vpop.f32.mrb[0].mxu0
  %v855 = vpop.f32.mrb[0].mxu0
  %v856 = vadd.f32 %v649, %v855
  %v857 = vpop.f32.mrb[0].mxu0
  %858 = vdwg.mxu0
  %vm859 = vcmask 7168
  %860 = vst.msk [vmem:[%s7] sm:$0xff] %vm859, %v733
  %861 = vst.msk [vmem:[%s7 + $0x8] sm:$0xff] %vm859, %v736
  %862 = vst.msk [vmem:[%s7 + $0x10] sm:$0xff] %vm859, %v741
  %863 = vst.msk [vmem:[%s7 + $0x18] sm:$0xff] %vm859, %v744
  %864 = vst.msk [vmem:[%s7 + $0x20] sm:$0xff] %vm859, %v749
  %865 = vst.msk [vmem:[%s7 + $0x28] sm:$0xff] %vm859, %v752
  %866 = vst.msk [vmem:[%s7 + $0x30] sm:$0xff] %vm859, %v757
  %867 = vst.msk [vmem:[%s7 + $0x38] sm:$0xff] %vm859, %v760
  %868 = vst.msk [vmem:[%s7 + $0x40] sm:$0xff] %vm859, %v765
  %869 = vst.msk [vmem:[%s7 + $0x48] sm:$0xff] %vm859, %v768
  %870 = vst.msk [vmem:[%s7 + $0x50] sm:$0xff] %vm859, %v773
  %871 = vst.msk [vmem:[%s7 + $0x58] sm:$0xff] %vm859, %v776
  %872 = vst.msk [vmem:[%s7 + $0x60] sm:$0xff] %vm859, %v781
  %873 = vst.msk [vmem:[%s7 + $0x68] sm:$0xff] %vm859, %v784
  %874 = vst.msk [vmem:[%s7 + $0x70] sm:$0xff] %vm859, %v789
  %875 = vst.msk [vmem:[%s7 + $0x78] sm:$0xff] %vm859, %v792
  %876 = vst.msk [vmem:[%s7 + $0x80] sm:$0xff] %vm859, %v797
  %877 = vst.msk [vmem:[%s7 + $0x88] sm:$0xff] %vm859, %v800
  %878 = vst.msk [vmem:[%s7 + $0x90] sm:$0xff] %vm859, %v805
  %879 = vst.msk [vmem:[%s7 + $0x98] sm:$0xff] %vm859, %v808
  %880 = vst.msk [vmem:[%s7 + $0xa0] sm:$0xff] %vm859, %v813
  %881 = vst.msk [vmem:[%s7 + $0xa8] sm:$0xff] %vm859, %v816
  %882 = vst.msk [vmem:[%s7 + $0xb0] sm:$0xff] %vm859, %v821
  %883 = vst.msk [vmem:[%s7 + $0xb8] sm:$0xff] %vm859, %v824
  %884 = vst.msk [vmem:[%s7 + $0xc0] sm:$0xff] %vm859, %v829
  %885 = vst.msk [vmem:[%s7 + $0xc8] sm:$0xff] %vm859, %v832
  %886 = vst.msk [vmem:[%s7 + $0xd0] sm:$0xff] %vm859, %v837
  %887 = vst.msk [vmem:[%s7 + $0xd8] sm:$0xff] %vm859, %v840
  %888 = vst.msk [vmem:[%s7 + $0xe0] sm:$0xff] %vm859, %v845
  %889 = vst.msk [vmem:[%s7 + $0xe8] sm:$0xff] %vm859, %v848
  %890 = vst.msk [vmem:[%s7 + $0xf0] sm:$0xff] %vm859, %v853
  %891 = vst.msk [vmem:[%s7 + $0xf8] sm:$0xff] %vm859, %v856
  // Predicated region
  $region30: #{tpu_custom_call.1} parent=0 // pred_check
    _
  $region31: #{tpu_custom_call.1} parent=0 // pred_check_branch
    %893 = sbr.rel (0) target = $region33
  $region32: #{tpu_custom_call.1} parent=0 // pred_region
    _
  $region33: #{tpu_custom_call.1} parent=0 // pred_fallthru
    _
  // Predicated region
  $region34: #{tpu_custom_call.1} parent=0 // pred_check
    _
  $region35: #{tpu_custom_call.1} parent=0 // pred_check_branch
    %895 = sbr.rel (0) target = $region37
  $region36: #{tpu_custom_call.1} parent=0 // pred_region
    _
  $region37: #{tpu_custom_call.1} parent=0 // pred_fallthru
    _

</llo_original>
